<compile_context>
chip_gen: v7x
topology: tpu7x:2x2x1
jax: 0.10.0
libtpu: 0.0.40
codegen_flags: <defaults>
</compile_context>

<pallas_src>
import math
from functools import partial

import jax
import jax.numpy as jnp
import numpy as np
from jax.experimental import pallas as pl
from jax.experimental.pallas import tpu as pltpu


def _instance_norm_kernel(x_ref, o_ref, *, epsilon):
    # x_ref / o_ref: [tile_rows, H*W]; one row == one (batch, channel) feature map.
    x = x_ref[...].astype(jnp.float32)
    mean = jnp.mean(x, axis=-1, keepdims=True)            # XLU lane reduce
    xc = x - mean
    var = jnp.mean(xc * xc, axis=-1, keepdims=True)        # XLU lane reduce
    inv = jax.lax.rsqrt(var + epsilon)                     # EUP
    o_ref[...] = (xc * inv).astype(o_ref.dtype)


def instance_norm(x, *, epsilon=1e-8, vmem_row_budget_bytes=16 * 1024 * 1024):
    """x: [B, C, H, W] -> [B, C, H, W], normalized per (B, C) over spatial dims."""
    B, C, H, W = x.shape
    R = B * C            # rows  (one per feature map)
    N = H * W            # lanes (reduction axis, kept whole per block)
    x2 = x.reshape(R, N)

    # Row-tile sizing: in-tile + out-tile, double-buffered, must fit a modest
    # VMEM budget (also safe on v7x's 64 MiB VMEM).  Tile must be a multiple of
    # 8 (sublane) unless it equals the full row extent.
    bytes_per_row = N * x2.dtype.itemsize
    max_rows = max(8, (vmem_row_budget_bytes // (4 * bytes_per_row)) // 8 * 8)
    if R <= max_rows:
        tile_rows = R                      # single block along rows (full dim OK)
    else:
        tile_rows = max_rows               # multiple of 8; grid covers the rest

    grid = (pl.cdiv(R, tile_rows),)

    out2 = pl.pallas_call(
        partial(_instance_norm_kernel, epsilon=float(epsilon)),
        out_shape=jax.ShapeDtypeStruct((R, N), x.dtype),
        grid=grid,
        in_specs=[pl.BlockSpec((tile_rows, N), lambda i: (i, 0))],
        out_specs=pl.BlockSpec((tile_rows, N), lambda i: (i, 0)),
        compiler_params=pltpu.CompilerParams(
            dimension_semantics=("parallel",),        # split row tiles across TCs (v7x)
            vmem_limit_bytes=64 * 1024 * 1024,
        ),
    )(x2)

    return out2.reshape(B, C, H, W)


if __name__ == "__main__":
    key = jax.random.PRNGKey(0)

    B, C, H, W = 2, 4, 16, 16
    x = jax.random.normal(key, (B, C, H, W), dtype=jnp.float32)

    out = instance_norm(x, epsilon=1e-8)
    out = jax.block_until_ready(out)

    # Pure-JAX reference of the same math.
    mean = jnp.mean(x, axis=(2, 3), keepdims=True)
    xc = x - mean
    ref = xc * jax.lax.rsqrt(jnp.mean(xc * xc, axis=(2, 3), keepdims=True) + 1e-8)

    assert out.shape == (B, C, H, W)
    assert jnp.allclose(out, ref, atol=1e-5, rtol=1e-5), (
        float(jnp.max(jnp.abs(out - ref))))

    print("KERNEL_OK")
</pallas_src>

<mosaic_0001>
module attributes {stable_mosaic.version = 11 : i64} {
  func.func @_instance_norm_kernel(%arg0: i32, %arg1: memref<8x256xf32, #tpu.memory_space<vmem>>, %arg2: memref<8x256xf32, #tpu.memory_space<vmem>>) attributes {dimension_semantics = [#tpu.dimension_semantics<parallel>], iteration_bounds = array<i64: 1>, scalar_prefetch = 0 : i64, scratch_operands = 0 : i64, tpu.core_type = #tpu.core_type<tc>, window_params = [{transform_indices = @transform_0, window_bounds = array<i64: 8, 256>}, {transform_indices = @transform_1, window_bounds = array<i64: 8, 256>}]} {
    %c0 = arith.constant 0 : index
    %c0_0 = arith.constant 0 : index
    %0 = vector.load %arg1[%c0, %c0_0] : memref<8x256xf32, #tpu.memory_space<vmem>>, vector<8x256xf32>
    %cst = arith.constant dense<0.000000e+00> : vector<8xf32>
    %1 = vector.multi_reduction <add>, %0, %cst [1] : vector<8x256xf32> to vector<8xf32>
    %2 = vector.shape_cast %1 : vector<8xf32> to vector<8x1xf32>
    %cst_1 = arith.constant 2.560000e+02 : f32
    %3 = vector.broadcast %cst_1 : f32 to vector<8x1xf32>
    %4 = arith.divf %2, %3 : vector<8x1xf32>
    %5 = vector.broadcast %4 : vector<8x1xf32> to vector<8x256xf32>
    %6 = arith.subf %0, %5 : vector<8x256xf32>
    %7 = arith.mulf %6, %6 : vector<8x256xf32>
    %cst_2 = arith.constant dense<0.000000e+00> : vector<8xf32>
    %8 = vector.multi_reduction <add>, %7, %cst_2 [1] : vector<8x256xf32> to vector<8xf32>
    %9 = vector.shape_cast %8 : vector<8xf32> to vector<8x1xf32>
    %cst_3 = arith.constant 2.560000e+02 : f32
    %10 = vector.broadcast %cst_3 : f32 to vector<8x1xf32>
    %11 = arith.divf %9, %10 : vector<8x1xf32>
    %cst_4 = arith.constant 9.99999993E-9 : f32
    %12 = vector.broadcast %cst_4 : f32 to vector<8x1xf32>
    %13 = arith.addf %11, %12 : vector<8x1xf32>
    %14 = math.rsqrt %13 : vector<8x1xf32>
    %15 = vector.broadcast %14 : vector<8x1xf32> to vector<8x256xf32>
    %16 = arith.mulf %6, %15 : vector<8x256xf32>
    %c0_5 = arith.constant 0 : index
    %c0_6 = arith.constant 0 : index
    %17 = vector.load %arg2[%c0_5, %c0_6] : memref<8x256xf32, #tpu.memory_space<vmem>>, vector<8x256xf32>
    tpu.vector_store %arg2[%c0_5, %c0_6], %16 {strides = array<i32>} : memref<8x256xf32, #tpu.memory_space<vmem>>, vector<8x256xf32>,
    return
  }
  func.func @transform_0(%arg0: i32) -> (i32, i32) {
    %c0_i32 = arith.constant 0 : i32
    %c0_i32_0 = arith.constant 0 : i32
    return %arg0, %c0_i32 : i32, i32
  }
  func.func @transform_1(%arg0: i32) -> (i32, i32) {
    %c0_i32 = arith.constant 0 : i32
    %c0_i32_0 = arith.constant 0 : i32
    return %arg0, %c0_i32 : i32, i32
  }
}

</mosaic_0001>

<llo_original>
// kernel: tpu_custom_call.1
$region0: #{tpu_custom_call.1}
  #allocation0 [shape = 'u32[]', space=smem, size = 0x4, offset = 0x4, fixed_abs, tag = 'smem constant byte address 0x4 - core index']
  #allocation1 [shape = 'u32[144,128]{1,0:T(1,128)}', space=vmem, size = 0x12000, scoped, tag = 'internal scratch']
  %s0 = inlined_call_operand.hbm [shape: f32[8,256], index: 0, kind: input, shape index: {}]
  %s1 = inlined_call_operand.hbm [shape: f32[8,256], index: 1, kind: output, shape index: {}]
  %s2 = sld [smem:[#allocation0]]
  $region18: #{tpu_custom_call.1} parent=0
    _
  %s4 = ssub.s32 1, %s2
  %s5 = scalar_select 0, %s4, %s2
  $region1: #{tpu_custom_call.1} parent=0
    #allocation2 [shape = 'u8[8192]{0}', space=vmem, size = 0x2000, scoped, tag = 'input window, operand 0, single buffered']
    #allocation3 [shape = 's32[1]{0}', space=sflag, size = 0x4, scoped, tag = 'scoped memory for tpu_custom_call.1']
    #allocation4 [shape = 's32[1]{0}', space=sflag, size = 0x4, scoped, tag = 'scoped memory for tpu_custom_call.1']
    #allocation5 [shape = 'u8[8192]{0}', space=vmem, size = 0x2000, scoped, tag = 'output window, operand 0, single buffered']
    %6 = vsyncpa [#allocation3], 0
    %7 = vsyncpa [#allocation4], 0
    // Predicated region
    $region2: #{tpu_custom_call.1} parent=1 // pred_check
      _
    $region3: #{tpu_custom_call.1} parent=1 // pred_check_branch
      %9 = sbr.rel (0) target = $region5
    $region4: #{tpu_custom_call.1} parent=1 // pred_region
      %s11 = ssub.s32 256, 256
      %12 = vsyncadd [#allocation3], %s11
      %s14 = sshll.u32 [#allocation2], 4
      %s15 = int_to_ptr.vmem [resolvable:$true] %s14
      %17 = dma.hbm_to_vmem [thread:$0]  %s0, 256, %s15, [#allocation3]
    $region5: #{tpu_custom_call.1} parent=1 // pred_fallthru
      _
    // Predicated region
    $region6: #{tpu_custom_call.1} parent=1 // pred_check
      _
    $region7: #{tpu_custom_call.1} parent=1 // pred_check_branch
      %19 = sbr.rel (0) target = $region9
    $region8: #{tpu_custom_call.1} parent=1 // pred_region
      %20 = dma.done [#allocation3], 256
    $region9: #{tpu_custom_call.1} parent=1 // pred_fallthru
      _
    %v21 = vld [vmem:[#allocation2] sm:$0xff]
    %v22 = vld [vmem:[#allocation2 + $0x8] sm:$0xff]
    %v23 = vadd.f32 %v21, %v22
    %24 = vadd.xlane.f32.xlu0 %v23
    %v25 = vpop.xlane.xlu0 %24
    %v26 = vrcp.pop 256.0
    %v27 = vmul.f32 %v25, %v26
    %v28 = vsub.f32 %v21, %v27
    %v29 = vsub.f32 %v22, %v27
    %v30 = vmul.f32 %v28, %v28
    %v31 = vmul.f32 %v29, %v29
    %v32 = vadd.f32 %v30, %v31
    %33 = vadd.xlane.f32.xlu0 %v32
    %v34 = vpop.xlane.xlu0 %33
    %v35 = vmul.f32 %v34, %v26
    %v36 = vadd.f32 %v35, 1e-08
    %v37 = vrsqrt.pop %v36
    %v38 = vmul.f32 %v28, %v37
    %v39 = vmul.f32 %v29, %v37
    %40 = vst [vmem:[#allocation5] sm:$0xff] %v38
    %41 = vst [vmem:[#allocation5 + $0x8] sm:$0xff] %v39
    // Predicated region
    $region10: #{tpu_custom_call.1} parent=1 // pred_check
      _
    $region11: #{tpu_custom_call.1} parent=1 // pred_check_branch
      %43 = sbr.rel (0) target = $region13
    $region12: #{tpu_custom_call.1} parent=1 // pred_region
      %s45 = ssub.s32 256, 256
      %46 = vsyncadd [#allocation4], %s45
      %s48 = sshll.u32 [#allocation5], 4
      %s49 = int_to_ptr.vmem [resolvable:$true] %s48
      %51 = dma.vmem_to_hbm [thread:$0]  %s49, 256, %s1, [#allocation4]
    $region13: #{tpu_custom_call.1} parent=1 // pred_fallthru
      _
    // Predicated region
    $region14: #{tpu_custom_call.1} parent=1 // pred_check
      _
    $region15: #{tpu_custom_call.1} parent=1 // pred_check_branch
      %53 = sbr.rel (0) target = $region17
    $region16: #{tpu_custom_call.1} parent=1 // pred_region
      %54 = dma.done [#allocation4], 256
    $region17: #{tpu_custom_call.1} parent=1 // pred_fallthru
      _
    %55 = vsyncpa [#allocation3], 1
    %56 = vsyncpa [#allocation4], 1

</llo_original>
